<compile_context>
chip_gen: v7x
topology: tpu7x:2x2x1
jax: 0.10.0
libtpu: 0.0.40
codegen_flags: <defaults>
</compile_context>

<pallas_src>
import jax
import jax.numpy as jnp
from jax.experimental import pallas as pl
from jax.experimental.pallas import tpu as pltpu

_LANE = 128
_TARGET_BLOCK_BYTES = 2 * 1024 * 1024   # ~2 MiB blocks: near-roofline streaming,
                                        # 4x fits v5e's 16 MiB scoped VMEM default.
_SPLIT_THRESHOLD_BYTES = 256 * 1024     # only force >=2 grid steps (v7x 2 TCs)
                                        # once the whole array is at least this big.


def _sub_kernel(x_ref, o_ref):
    x = x_ref[...]
    # Reproduce semantics exactly: (x - x) - 2  (propagates NaN/Inf like torch).
    o_ref[...] = (x - x) - jnp.asarray(2, dtype=x.dtype)


def _round_up(x: int, m: int) -> int:
    return ((x + m - 1) // m) * m


def _min_row_tile(dtype) -> int:
    """Native sublane tile: 8 rows for 32-bit, 16 for 16-bit, 32 for 8-bit."""
    itemsize = jnp.dtype(dtype).itemsize
    if itemsize >= 4:
        return 8
    if itemsize == 2:
        return 16
    return 32


def _pick_row_tile(rows: int, dtype) -> int:
    """Row tile for a (rows, 128) array: ~2 MiB, sublane-aligned, >=2 grid steps
    for medium+ inputs so both v7x TensorCores get work."""
    itemsize = jnp.dtype(dtype).itemsize
    min_rows = _min_row_tile(dtype)
    target_rows = max(min_rows, _TARGET_BLOCK_BYTES // (_LANE * itemsize))
    tr = min(target_rows, _round_up(rows, min_rows))
    total_bytes = rows * _LANE * itemsize
    if total_bytes >= _SPLIT_THRESHOLD_BYTES:
        # Cap at ~half the rows so the grid has at least 2 steps.
        half = _round_up(pl.cdiv(rows, 2), min_rows)
        tr = min(tr, half)
    tr = max(tr, min_rows)
    return _round_up(tr, min_rows)


def _sub2d(x2d: jax.Array) -> jax.Array:
    """Run the elementwise kernel over a lane-dense (rows, 128) array."""
    rows, _ = x2d.shape
    dtype = x2d.dtype
    itemsize = jnp.dtype(dtype).itemsize

    tr = _pick_row_tile(rows, dtype)
    grid = (pl.cdiv(rows, tr),)

    block_bytes = tr * _LANE * itemsize
    # Double-buffered input + output = 4 x block, plus headroom.
    vmem_limit = min(max(4 * block_bytes + (4 << 20), 16 << 20), 64 << 20)

    return pl.pallas_call(
        _sub_kernel,
        out_shape=jax.ShapeDtypeStruct((rows, _LANE), dtype),
        grid=grid,
        in_specs=[pl.BlockSpec((tr, _LANE), lambda i: (i, 0))],
        out_specs=pl.BlockSpec((tr, _LANE), lambda i: (i, 0)),
        compiler_params=pltpu.CompilerParams(
            dimension_semantics=("parallel",),
            vmem_limit_bytes=vmem_limit,
        ),
    )(x2d)


def sub_forward(x: jax.Array) -> jax.Array:
    """Elementwise (x - x) - 2 computed in a Pallas TPU kernel."""
    orig_shape = x.shape
    dtype = x.dtype
    total = x.size

    if total == 0:
        # Nothing to compute for empty arrays.
        return (x - x) - jnp.asarray(2, dtype)

    if total % _LANE == 0:
        # Lane-dense 2D view, no padding copies.
        rows = total // _LANE
        out2d = _sub2d(x.reshape(rows, _LANE))
        return out2d.reshape(orig_shape)

    # Ragged element count: pad the flat view up to a sublane*lane multiple,
    # run the same tiled/pipelined path, then slice the tail off.
    min_rows = _min_row_tile(dtype)
    pad_unit = min_rows * _LANE
    padded_total = _round_up(total, pad_unit)
    flat = jnp.pad(x.reshape(-1), (0, padded_total - total))
    out2d = _sub2d(flat.reshape(padded_total // _LANE, _LANE))
    return out2d.reshape(-1)[:total].reshape(orig_shape)


if __name__ == "__main__":
    key = jax.random.PRNGKey(0)
    x = jax.random.normal(key, (2, 4, 16, 16), dtype=jnp.float32)

    out = jax.block_until_ready(sub_forward(x))

    # Reference: (x - x) - 2 == -2 everywhere for finite inputs.
    ref = (x - x) - 2.0
    assert out.shape == x.shape, (out.shape, x.shape)
    assert out.dtype == x.dtype, (out.dtype, x.dtype)
    assert jnp.allclose(out, ref), "mismatch vs reference"

    print("KERNEL_OK")
</pallas_src>

<mosaic_0001>
module attributes {stable_mosaic.version = 11 : i64} {
  func.func @_sub_kernel(%arg0: i32, %arg1: memref<16x128xf32, #tpu.memory_space<vmem>>, %arg2: memref<16x128xf32, #tpu.memory_space<vmem>>) attributes {dimension_semantics = [#tpu.dimension_semantics<parallel>], iteration_bounds = array<i64: 1>, scalar_prefetch = 0 : i64, scratch_operands = 0 : i64, tpu.core_type = #tpu.core_type<tc>, window_params = [{transform_indices = @transform_0, window_bounds = array<i64: 16, 128>}, {transform_indices = @transform_1, window_bounds = array<i64: 16, 128>}]} {
    %c0 = arith.constant 0 : index
    %c0_0 = arith.constant 0 : index
    %0 = vector.load %arg1[%c0, %c0_0] : memref<16x128xf32, #tpu.memory_space<vmem>>, vector<16x128xf32>
    %1 = arith.subf %0, %0 : vector<16x128xf32>
    %cst = arith.constant 2.000000e+00 : f32
    %2 = vector.broadcast %cst : f32 to vector<16x128xf32>
    %3 = arith.subf %1, %2 : vector<16x128xf32>
    %c0_1 = arith.constant 0 : index
    %c0_2 = arith.constant 0 : index
    %4 = vector.load %arg2[%c0_1, %c0_2] : memref<16x128xf32, #tpu.memory_space<vmem>>, vector<16x128xf32>
    tpu.vector_store %arg2[%c0_1, %c0_2], %3 {strides = array<i32>} : memref<16x128xf32, #tpu.memory_space<vmem>>, vector<16x128xf32>,
    return
  }
  func.func @transform_0(%arg0: i32) -> (i32, i32) {
    %c0_i32 = arith.constant 0 : i32
    %c0_i32_0 = arith.constant 0 : i32
    return %arg0, %c0_i32 : i32, i32
  }
  func.func @transform_1(%arg0: i32) -> (i32, i32) {
    %c0_i32 = arith.constant 0 : i32
    %c0_i32_0 = arith.constant 0 : i32
    return %arg0, %c0_i32 : i32, i32
  }
}

</mosaic_0001>

<llo_original>
// kernel: tpu_custom_call.1
$region0: #{tpu_custom_call.1}
  #allocation0 [shape = 'u32[]', space=smem, size = 0x4, offset = 0x4, fixed_abs, tag = 'smem constant byte address 0x4 - core index']
  #allocation1 [shape = 'u32[144,128]{1,0:T(1,128)}', space=vmem, size = 0x12000, scoped, tag = 'internal scratch']
  %s0 = inlined_call_operand.hbm [shape: f32[16,128], index: 0, kind: input, shape index: {}]
  %s1 = inlined_call_operand.hbm [shape: f32[16,128], index: 1, kind: output, shape index: {}]
  %s2 = sld [smem:[#allocation0]]
  $region18: #{tpu_custom_call.1} parent=0
    _
  %s4 = ssub.s32 1, %s2
  %s5 = scalar_select 0, %s4, %s2
  $region1: #{tpu_custom_call.1} parent=0
    #allocation2 [shape = 'u8[8192]{0}', space=vmem, size = 0x2000, scoped, tag = 'input window, operand 0, single buffered']
    #allocation3 [shape = 's32[1]{0}', space=sflag, size = 0x4, scoped, tag = 'scoped memory for tpu_custom_call.1']
    #allocation4 [shape = 's32[1]{0}', space=sflag, size = 0x4, scoped, tag = 'scoped memory for tpu_custom_call.1']
    #allocation5 [shape = 'u8[8192]{0}', space=vmem, size = 0x2000, scoped, tag = 'output window, operand 0, single buffered']
    %6 = vsyncpa [#allocation3], 0
    %7 = vsyncpa [#allocation4], 0
    // Predicated region
    $region2: #{tpu_custom_call.1} parent=1 // pred_check
      _
    $region3: #{tpu_custom_call.1} parent=1 // pred_check_branch
      %9 = sbr.rel (0) target = $region5
    $region4: #{tpu_custom_call.1} parent=1 // pred_region
      %s11 = ssub.s32 256, 256
      %12 = vsyncadd [#allocation3], %s11
      %s13 = sshll.u32 [#allocation2], 4
      %s14 = int_to_ptr.vmem [resolvable:$true] %s13
      %19 = dma.hbm_to_vmem [thread:$0]  %s0, 256, %s14, [#allocation3], 128, 128, 8
    $region5: #{tpu_custom_call.1} parent=1 // pred_fallthru
      _
    // Predicated region
    $region6: #{tpu_custom_call.1} parent=1 // pred_check
      _
    $region7: #{tpu_custom_call.1} parent=1 // pred_check_branch
      %21 = sbr.rel (0) target = $region9
    $region8: #{tpu_custom_call.1} parent=1 // pred_region
      %22 = dma.done [#allocation3], 256
    $region9: #{tpu_custom_call.1} parent=1 // pred_fallthru
      _
    %v23 = vld [vmem:[#allocation2] sm:$0xff]
    %v24 = vld [vmem:[#allocation2 + $0x8] sm:$0xff]
    %v25 = vsub.f32 %v23, %v23
    %v26 = vsub.f32 %v24, %v24
    %v27 = vsub.f32 %v25, 2.0
    %v28 = vsub.f32 %v26, 2.0
    %29 = vst [vmem:[#allocation5] sm:$0xff] %v27
    %30 = vst [vmem:[#allocation5 + $0x8] sm:$0xff] %v28
    // Predicated region
    $region10: #{tpu_custom_call.1} parent=1 // pred_check
      _
    $region11: #{tpu_custom_call.1} parent=1 // pred_check_branch
      %32 = sbr.rel (0) target = $region13
    $region12: #{tpu_custom_call.1} parent=1 // pred_region
      %s34 = ssub.s32 256, 256
      %35 = vsyncadd [#allocation4], %s34
      %s36 = sshll.u32 [#allocation5], 4
      %s37 = int_to_ptr.vmem [resolvable:$true] %s36
      %42 = dma.vmem_to_hbm [thread:$0]  %s37, 256, %s1, [#allocation4], 128, 128, 8
    $region13: #{tpu_custom_call.1} parent=1 // pred_fallthru
      _
    // Predicated region
    $region14: #{tpu_custom_call.1} parent=1 // pred_check
      _
    $region15: #{tpu_custom_call.1} parent=1 // pred_check_branch
      %44 = sbr.rel (0) target = $region17
    $region16: #{tpu_custom_call.1} parent=1 // pred_region
      %45 = dma.done [#allocation4], 256
    $region17: #{tpu_custom_call.1} parent=1 // pred_fallthru
      _
    %46 = vsyncpa [#allocation3], 1
    %47 = vsyncpa [#allocation4], 1

</llo_original>
